<compile_context>
chip_gen: v7x
topology: tpu7x:2x2x1
jax: 0.10.0
libtpu: 0.0.40
codegen_flags: <defaults>
</compile_context>

<pallas_src>
import functools

import jax
import jax.numpy as jnp
from jax.experimental import pallas as pl
from jax.experimental.pallas import tpu as pltpu


def make_positional_encoding(num_hiddens: int, max_len: int = 1000) -> jnp.ndarray:
    """Builds P exactly like the PyTorch __init__: float32, shape (1, max_len, H)."""
    pos = jnp.arange(max_len, dtype=jnp.float32).reshape(-1, 1)
    div = jnp.power(
        10000.0, jnp.arange(0, num_hiddens, 2, dtype=jnp.float32) / num_hiddens
    )
    x = pos / div  # (max_len, H//2)
    p = jnp.zeros((1, max_len, num_hiddens), dtype=jnp.float32)
    p = p.at[:, :, 0::2].set(jnp.sin(x))
    p = p.at[:, :, 1::2].set(jnp.cos(x))
    return p


# ---------------------------------------------------------------------------
# Kernels (pure elementwise; operate on lane-dense 2-D blocks)
# ---------------------------------------------------------------------------

def _posenc_kernel(x_ref, p_ref, o_ref):
    # Eval mode: dropout is identity, so this is the full forward pass.
    # p_ref block is (1, td) and broadcasts against the (tb, td) x block.
    o_ref[...] = x_ref[...] + p_ref[...]


def _posenc_dropout_kernel(x_ref, p_ref, bits_ref, o_ref, *, threshold, scale):
    # Training mode: add positional table, then inverted dropout.
    # keep probability = 1 - rate, decided by an exact uint32 threshold compare.
    y = x_ref[...] + p_ref[...]
    keep = bits_ref[...] >= jnp.uint32(threshold)
    o_ref[...] = jnp.where(keep, y * scale, jnp.zeros_like(y))


# ---------------------------------------------------------------------------
# Wrapper
# ---------------------------------------------------------------------------

def _pick_tile(extent: int, align: int, max_elems: int) -> int:
    """Largest multiple of `align` that divides `extent` and is <= max_elems.

    Falls back to the full extent (a full-extent block dim is always legal
    under Pallas' (8,128) divisibility rule).
    """
    t = (min(extent, max_elems) // align) * align
    while t >= align:
        if extent % t == 0:
            return t
        t -= align
    return extent


def positional_encoding_forward(
    x, p_full, *, dropout_rate=0.0, training=False, rng_key=None
):
    """X + P[:, :S, :] followed by dropout (identity in eval mode)."""
    B, S, H = x.shape
    D = S * H

    # Lane-dense layout: flatten (S, H) so the last block dim can be a
    # multiple of 128 instead of H (=32 in the test), avoiding masked stores.
    x2 = x.reshape(B, D)
    p2 = p_full[:, :S, :].reshape(1, D).astype(x.dtype)  # cast P once, here

    itemsize = jnp.dtype(x.dtype).itemsize
    # ~2 MiB per block: x/out/bits double-buffered plus P stays far below the
    # 32 MiB scoped-VMEM default on v7x (v5e/v6e have 128 MiB, so no issue).
    block_budget_bytes = 2 * 1024 * 1024
    elems_budget = max(128, block_budget_bytes // itemsize)

    td = _pick_tile(D, 128, elems_budget)          # lane-tile (multiple of 128)
    rows_budget = max(1, elems_budget // td)
    tb = B if B <= rows_budget else _pick_tile(B, 8, rows_budget)

    grid = (B // tb, D // td)                      # tiles divide exactly

    x_spec = pl.BlockSpec((tb, td), lambda i, j: (i, j))
    p_spec = pl.BlockSpec((1, td), lambda i, j: (0, j))
    out_spec = pl.BlockSpec((tb, td), lambda i, j: (i, j))
    out_shape = jax.ShapeDtypeStruct((B, D), x.dtype)

    compiler_params = pltpu.CompilerParams(
        dimension_semantics=("parallel", "parallel"),
        vmem_limit_bytes=32 * 1024 * 1024,
    )

    if (not training) or dropout_rate <= 0.0:
        out2 = pl.pallas_call(
            _posenc_kernel,
            out_shape=out_shape,
            grid_spec=pltpu.PrefetchScalarGridSpec(
                num_scalar_prefetch=0,
                grid=grid,
                in_specs=[x_spec, p_spec],
                out_specs=out_spec,
            ),
            compiler_params=compiler_params,
        )(x2, p2)
        return out2.reshape(B, S, H)

    if dropout_rate >= 1.0:
        return jnp.zeros_like(x)

    # TODO(synk): PyTorch's exact dropout RNG stream is not reproducible; the
    # mask comes from jax.random instead (the in-kernel TPU PRNG primitives
    # have no interpret/CPU lowering, so bits are generated in the wrapper).
    if rng_key is None:
        rng_key = jax.random.PRNGKey(0)
    bits = jax.random.bits(rng_key, (B, D), dtype=jnp.uint32)

    threshold = min(int(round(dropout_rate * 2.0**32)), 2**32 - 1)
    scale = 1.0 / (1.0 - dropout_rate)
    kernel = functools.partial(
        _posenc_dropout_kernel, threshold=threshold, scale=scale
    )
    bits_spec = pl.BlockSpec((tb, td), lambda i, j: (i, j))

    out2 = pl.pallas_call(
        kernel,
        out_shape=out_shape,
        grid_spec=pltpu.PrefetchScalarGridSpec(
            num_scalar_prefetch=0,
            grid=grid,
            in_specs=[x_spec, p_spec, bits_spec],
            out_specs=out_spec,
        ),
        compiler_params=compiler_params,
    )(x2, p2, bits)
    return out2.reshape(B, S, H)


if __name__ == "__main__":
    # Small shapes consistent with the module: batch=2, seq=8, num_hiddens=32.
    B, S, H = 2, 8, 32
    max_len = 1000
    dropout_rate = 0.1

    key = jax.random.PRNGKey(0)
    kx, kd = jax.random.split(key)
    x = jax.random.normal(kx, (B, S, H), dtype=jnp.float32)
    p_full = make_positional_encoding(H, max_len)
    ref = x + p_full[:, :S, :]

    # Eval-mode forward (dropout is identity) — exact match to the reference.
    out = positional_encoding_forward(
        x, p_full, dropout_rate=dropout_rate, training=False
    )
    out = jax.block_until_ready(out)
    assert jnp.allclose(out, ref, atol=1e-6), "Pallas eval-mode output mismatch"

    # Training-mode forward (inverted dropout; RNG stream differs from PyTorch).
    out_tr = positional_encoding_forward(
        x, p_full, dropout_rate=dropout_rate, training=True, rng_key=kd
    )
    out_tr = jax.block_until_ready(out_tr)
    scale = 1.0 / (1.0 - dropout_rate)
    ok = jnp.isclose(out_tr, 0.0) | jnp.isclose(out_tr, ref * scale, atol=1e-5)
    assert bool(jnp.all(ok)), "training-mode values not in {0, (x+P)/(1-p)}"

    print("KERNEL_OK")
</pallas_src>

<mosaic_0001>
module attributes {stable_mosaic.version = 11 : i64} {
  func.func @_posenc_kernel(%arg0: i32, %arg1: i32, %arg2: memref<2x256xf32, #tpu.memory_space<vmem>>, %arg3: memref<1x256xf32, #tpu.memory_space<vmem>>, %arg4: memref<2x256xf32, #tpu.memory_space<vmem>>) attributes {dimension_semantics = [#tpu.dimension_semantics<parallel>, #tpu.dimension_semantics<parallel>], iteration_bounds = array<i64: 1, 1>, scalar_prefetch = 0 : i64, scratch_operands = 0 : i64, tpu.core_type = #tpu.core_type<tc>, window_params = [{transform_indices = @transform_0, window_bounds = array<i64: 2, 256>}, {transform_indices = @transform_1, window_bounds = array<i64: 1, 256>}, {transform_indices = @transform_2, window_bounds = array<i64: 2, 256>}]} {
    %c0 = arith.constant 0 : index
    %c0_0 = arith.constant 0 : index
    %0 = vector.load %arg2[%c0, %c0_0] : memref<2x256xf32, #tpu.memory_space<vmem>>, vector<2x256xf32>
    %c0_1 = arith.constant 0 : index
    %c0_2 = arith.constant 0 : index
    %1 = vector.load %arg3[%c0_1, %c0_2] : memref<1x256xf32, #tpu.memory_space<vmem>>, vector<1x256xf32>
    %2 = vector.broadcast %1 : vector<1x256xf32> to vector<2x256xf32>
    %3 = arith.addf %0, %2 : vector<2x256xf32>
    %c0_3 = arith.constant 0 : index
    %c0_4 = arith.constant 0 : index
    %4 = vector.load %arg4[%c0_3, %c0_4] : memref<2x256xf32, #tpu.memory_space<vmem>>, vector<2x256xf32>
    tpu.vector_store %arg4[%c0_3, %c0_4], %3 {strides = array<i32>} : memref<2x256xf32, #tpu.memory_space<vmem>>, vector<2x256xf32>,
    return
  }
  func.func @transform_0(%arg0: i32, %arg1: i32) -> (i32, i32) {
    %c0_i32 = arith.constant 0 : i32
    return %arg0, %arg1 : i32, i32
  }
  func.func @transform_1(%arg0: i32, %arg1: i32) -> (i32, i32) {
    %c0_i32 = arith.constant 0 : i32
    %c0_i32_0 = arith.constant 0 : i32
    return %c0_i32, %arg1 : i32, i32
  }
  func.func @transform_2(%arg0: i32, %arg1: i32) -> (i32, i32) {
    %c0_i32 = arith.constant 0 : i32
    return %arg0, %arg1 : i32, i32
  }
}

</mosaic_0001>

<llo_original>
// kernel: tpu_custom_call.1
$region0: #{tpu_custom_call.1}
  #allocation0 [shape = 'u32[]', space=smem, size = 0x4, offset = 0x4, fixed_abs, tag = 'smem constant byte address 0x4 - core index']
  #allocation1 [shape = 'u32[144,128]{1,0:T(1,128)}', space=vmem, size = 0x12000, scoped, tag = 'internal scratch']
  %s0 = inlined_call_operand.hbm [shape: f32[2,256], index: 0, kind: input, shape index: {}]
  %s1 = inlined_call_operand.vmem [shape: f32[1,256], index: 1, kind: input, shape index: {}]
  %s2 = inlined_call_operand.hbm [shape: f32[2,256], index: 2, kind: output, shape index: {}]
  %s3 = sld [smem:[#allocation0]]
  $region22: #{tpu_custom_call.1} parent=0
    _
  %s5 = ssub.s32 1, %s3
  %s6 = scalar_select 0, %s5, %s3
  $region1: #{tpu_custom_call.1} parent=0
    #allocation2 [shape = 'u8[2048]{0}', space=vmem, size = 0x800, scoped, tag = 'input window, operand 0, single buffered']
    #allocation3 [shape = 's32[1]{0}', space=sflag, size = 0x4, scoped, tag = 'scoped memory for tpu_custom_call.1']
    #allocation4 [shape = 's32[1]{0}', space=sflag, size = 0x4, scoped, tag = 'scoped memory for tpu_custom_call.1']
    #allocation5 [shape = 'u8[2048]{0}', space=vmem, size = 0x800, scoped, tag = 'output window, operand 0, single buffered']
    %7 = vsyncpa [#allocation3], 0
    %8 = vsyncpa [#allocation4], 0
    // Predicated region
    $region2: #{tpu_custom_call.1} parent=1 // pred_check
      _
    $region3: #{tpu_custom_call.1} parent=1 // pred_check_branch
      %10 = sbr.rel (0) target = $region5
    $region4: #{tpu_custom_call.1} parent=1 // pred_region
      %s12 = ssub.s32 64, 64
      %13 = vsyncadd [#allocation3], %s12
      %s15 = sshll.u32 [#allocation2], 4
      %s16 = int_to_ptr.vmem [resolvable:$true] %s15
      %18 = dma.hbm_to_vmem [thread:$0]  %s0, 64, %s16, [#allocation3]
    $region5: #{tpu_custom_call.1} parent=1 // pred_fallthru
      _
    // Predicated region
    $region6: #{tpu_custom_call.1} parent=1 // pred_check
      _
    $region7: #{tpu_custom_call.1} parent=1 // pred_check_branch
      %20 = sbr.rel (0) target = $region9
    $region8: #{tpu_custom_call.1} parent=1 // pred_region
      _
    $region9: #{tpu_custom_call.1} parent=1 // pred_fallthru
      _
    // Predicated region
    $region10: #{tpu_custom_call.1} parent=1 // pred_check
      _
    $region11: #{tpu_custom_call.1} parent=1 // pred_check_branch
      %22 = sbr.rel (0) target = $region13
    $region12: #{tpu_custom_call.1} parent=1 // pred_region
      %23 = dma.done [#allocation3], 64
    $region13: #{tpu_custom_call.1} parent=1 // pred_fallthru
      _
    %v24 = vld [vmem:[#allocation2] sm:$0xf]
    %v25 = vld [vmem:[%s1] sm:$0x3]
    %v27 = vlaneseq
    %v28 = vshrl.u32 %v27, 7
    %v29 = vsub.s32 0, %v28
    %v30 = vrot.slane %v25, %v29
    %v31 = vlaneseq
    %v32 = vshrl.u32 %v31, 7
    %v33 = vsub.s32 1, %v32
    %v34 = vrot.slane %v25, %v33
    %v35 = vcombine.low %v30, %v34
    %v37 = vunpack.c.l.s4 1983009808
    %v38 = vunpack.c.0.s8 %v37
    %v39 = vlaneseq
    %v40 = vshrl.u32 %v39, 7
    %v41 = vsub.s32 %v38, %v40
    %v42 = vrot.slane %v35, %v41
    %v44 = vadd.f32 %v24, %v42
    %45 = vst [vmem:[#allocation5] sm:$0xf] %v44
    // Predicated region
    $region14: #{tpu_custom_call.1} parent=1 // pred_check
      _
    $region15: #{tpu_custom_call.1} parent=1 // pred_check_branch
      %47 = sbr.rel (0) target = $region17
    $region16: #{tpu_custom_call.1} parent=1 // pred_region
      %s49 = ssub.s32 64, 64
      %50 = vsyncadd [#allocation4], %s49
      %s52 = sshll.u32 [#allocation5], 4
      %s53 = int_to_ptr.vmem [resolvable:$true] %s52
      %55 = dma.vmem_to_hbm [thread:$0]  %s53, 64, %s2, [#allocation4]
    $region17: #{tpu_custom_call.1} parent=1 // pred_fallthru
      _
    // Predicated region
    $region18: #{tpu_custom_call.1} parent=1 // pred_check
      _
    $region19: #{tpu_custom_call.1} parent=1 // pred_check_branch
      %57 = sbr.rel (0) target = $region21
    $region20: #{tpu_custom_call.1} parent=1 // pred_region
      %58 = dma.done [#allocation4], 64
    $region21: #{tpu_custom_call.1} parent=1 // pred_fallthru
      _
    %59 = vsyncpa [#allocation3], 1
    %60 = vsyncpa [#allocation4], 1

</llo_original>
